<compile_context>
chip_gen: v7x
topology: tpu7x:2x2x1
jax: 0.10.0
libtpu: 0.0.40
codegen_flags: <defaults>
</compile_context>

<pallas_src>
import jax
import jax.numpy as jnp
from jax.experimental import pallas as pl
from jax.experimental.pallas import tpu as pltpu

_EPS = 1e-12  # F.normalize default eps


def _round_up(v: int, m: int) -> int:
    return (v + m - 1) // m * m


def _angle_simple_linear_kernel(x_ref, w_ref, invw_ref, o_ref):
    x = x_ref[...]          # (TM, K)  native dtype -> MXU operand
    w = w_ref[...]          # (K, TN)  native dtype -> MXU operand

    # Row L2 inv-norms in f32. The x tile is already resident in VMEM for the
    # matmul, so this is cheap VPU/XLU/EUP work compared to the MXU push.
    xf = x.astype(jnp.float32)
    row_sumsq = jnp.sum(xf * xf, axis=1, keepdims=True)              # (TM, 1)
    inv_x = jax.lax.rsqrt(jnp.maximum(row_sumsq, _EPS * _EPS))       # 1/max(||x||, eps)

    # MXU matmul on original operands with an f32 accumulator.
    cos = jnp.dot(x, w, preferred_element_type=jnp.float32)          # (TM, TN)

    # Rank-1 output-side scaling replaces normalizing full x / W copies.
    cos = cos * inv_x * invw_ref[...]                                # (TM,1)*(1,TN) bcast
    o_ref[...] = jnp.clip(cos, -1.0, 1.0).astype(o_ref.dtype)


def angle_simple_linear(x: jax.Array, weight: jax.Array, *, tm: int = 128, tn: int = 128) -> jax.Array:
    """cos of angles between rows of x (N, K) and columns of weight (K, out), clamped to [-1, 1]."""
    n, k = x.shape
    k_w, out = weight.shape
    assert k_w == k

    # Column inv-norms hoisted out of the per-N-tile loop (tiny (1, out) vector).
    w_sumsq = jnp.sum(weight.astype(jnp.float32) ** 2, axis=0, keepdims=True)
    inv_w = jax.lax.rsqrt(jnp.maximum(w_sumsq, _EPS * _EPS))

    # Tile sizes: sublane-aligned rows, lane-dense (multiple-of-128) output columns.
    tm = min(tm, _round_up(n, 8))
    n_pad = _round_up(n, tm)
    out_pad = _round_up(out, tn)

    # Zero-padding is safe: zero rows/cols give cos == 0 (inv-norm stays finite
    # because of the eps clamp), and the pad is sliced off below.
    x_p = jnp.pad(x, ((0, n_pad - n), (0, 0)))
    w_p = jnp.pad(weight, ((0, 0), (0, out_pad - out)))
    inv_w_p = jnp.pad(inv_w, ((0, 0), (0, out_pad - out)), constant_values=1.0)

    grid = (n_pad // tm, out_pad // tn)

    # NOTE: K (in_features) is kept whole inside each tile so both norms stay
    # one-pass. For very large K, add an "arbitrary" K grid axis with an f32
    # VMEM accumulator (P3 pattern) — not needed at these feature sizes.
    out_padded = pl.pallas_call(
        _angle_simple_linear_kernel,
        out_shape=jax.ShapeDtypeStruct((n_pad, out_pad), jnp.float32),
        grid=grid,
        in_specs=[
            pl.BlockSpec((tm, k), lambda i, j: (i, 0)),   # x rows for this N-tile
            pl.BlockSpec((k, tn), lambda i, j: (0, j)),   # weight columns for this out-tile
            pl.BlockSpec((1, tn), lambda i, j: (0, j)),   # precomputed column inv-norms
        ],
        out_specs=pl.BlockSpec((tm, tn), lambda i, j: (i, j)),
        compiler_params=pltpu.CompilerParams(
            dimension_semantics=("parallel", "parallel"),
            vmem_limit_bytes=48 * 1024 * 1024,
        ),
    )(x_p, w_p, inv_w_p)

    return out_padded[:n, :out]


def init_angle_simple_linear_weight(key, in_features: int, out_features: int) -> jax.Array:
    """Mirror of the PyTorch init:
    uniform_(-1, 1).renorm_(2, 1, 1e-5).mul_(1e5)  => each column has L2 norm <= 1.
    """
    w = jax.random.uniform(key, (in_features, out_features), jnp.float32, -1.0, 1.0)
    col_norm = jnp.sqrt(jnp.sum(w * w, axis=0, keepdims=True))  # (1, out)
    maxnorm = 1e-5
    scale = jnp.where(col_norm > maxnorm, maxnorm / (col_norm + 1e-7), 1.0)
    return w * scale * 1e5


if __name__ == "__main__":
    key = jax.random.PRNGKey(0)
    k_x, k_w = jax.random.split(key)

    batch, in_features, out_features = 8, 32, 16
    x = jax.random.normal(k_x, (batch, in_features), jnp.float32)
    weight = init_angle_simple_linear_weight(k_w, in_features, out_features)

    out = angle_simple_linear(x, weight)
    jax.block_until_ready(out)

    # Reference check in plain JAX (same math as the PyTorch forward).
    xn = x / jnp.maximum(jnp.linalg.norm(x, axis=1, keepdims=True), _EPS)
    wn = weight / jnp.maximum(jnp.linalg.norm(weight, axis=0, keepdims=True), _EPS)
    ref = jnp.clip(xn @ wn, -1.0, 1.0)
    assert out.shape == (batch, out_features)
    assert jnp.max(jnp.abs(out - ref)) < 1e-5

    print("KERNEL_OK")
</pallas_src>

<mosaic_0001>
module attributes {stable_mosaic.version = 11 : i64} {
  func.func @_angle_simple_linear_kernel(%arg0: i32, %arg1: i32, %arg2: memref<8x32xf32, #tpu.memory_space<vmem>>, %arg3: memref<32x128xf32, #tpu.memory_space<vmem>>, %arg4: memref<1x128xf32, #tpu.memory_space<vmem>>, %arg5: memref<8x128xf32, #tpu.memory_space<vmem>>) attributes {dimension_semantics = [#tpu.dimension_semantics<parallel>, #tpu.dimension_semantics<parallel>], iteration_bounds = array<i64: 1, 1>, scalar_prefetch = 0 : i64, scratch_operands = 0 : i64, tpu.core_type = #tpu.core_type<tc>, window_params = [{transform_indices = @transform_0, window_bounds = array<i64: 8, 32>}, {transform_indices = @transform_1, window_bounds = array<i64: 32, 128>}, {transform_indices = @transform_2, window_bounds = array<i64: 1, 128>}, {transform_indices = @transform_3, window_bounds = array<i64: 8, 128>}]} {
    %c0 = arith.constant 0 : index
    %c0_0 = arith.constant 0 : index
    %0 = vector.load %arg2[%c0, %c0_0] : memref<8x32xf32, #tpu.memory_space<vmem>>, vector<8x32xf32>
    %c0_1 = arith.constant 0 : index
    %c0_2 = arith.constant 0 : index
    %1 = vector.load %arg3[%c0_1, %c0_2] : memref<32x128xf32, #tpu.memory_space<vmem>>, vector<32x128xf32>
    %2 = arith.mulf %0, %0 : vector<8x32xf32>
    %cst = arith.constant dense<0.000000e+00> : vector<8xf32>
    %3 = vector.multi_reduction <add>, %2, %cst [1] : vector<8x32xf32> to vector<8xf32>
    %4 = vector.shape_cast %3 : vector<8xf32> to vector<8x1xf32>
    %cst_3 = arith.constant 1.000000e-24 : f32
    %5 = vector.broadcast %cst_3 : f32 to vector<8x1xf32>
    %6 = arith.maximumf %4, %5 : vector<8x1xf32>
    %7 = math.rsqrt %6 : vector<8x1xf32>
    %cst_4 = arith.constant dense<0.000000e+00> : vector<8x128xf32>
    %8 = tpu.matmul %0, %1, %cst_4 {dimension_numbers = #tpu.dot_dimension_numbers<[1], [0], [0], [1], [0, 0, 1, 1], [], []>} : vector<8x32xf32>, vector<32x128xf32>, vector<8x128xf32> -> vector<8x128xf32>
    %9 = vector.broadcast %7 : vector<8x1xf32> to vector<8x128xf32>
    %10 = arith.mulf %8, %9 : vector<8x128xf32>
    %c0_5 = arith.constant 0 : index
    %c0_6 = arith.constant 0 : index
    %11 = vector.load %arg4[%c0_5, %c0_6] : memref<1x128xf32, #tpu.memory_space<vmem>>, vector<1x128xf32>
    %12 = vector.broadcast %11 : vector<1x128xf32> to vector<8x128xf32>
    %13 = arith.mulf %10, %12 : vector<8x128xf32>
    %cst_7 = arith.constant -1.000000e+00 : f32
    %cst_8 = arith.constant 1.000000e+00 : f32
    %14 = vector.broadcast %cst_7 : f32 to vector<8x128xf32>
    %15 = arith.maximumf %14, %13 : vector<8x128xf32>
    %16 = vector.broadcast %cst_8 : f32 to vector<8x128xf32>
    %17 = arith.minimumf %16, %15 : vector<8x128xf32>
    %c0_9 = arith.constant 0 : index
    %c0_10 = arith.constant 0 : index
    %18 = vector.load %arg5[%c0_9, %c0_10] : memref<8x128xf32, #tpu.memory_space<vmem>>, vector<8x128xf32>
    tpu.vector_store %arg5[%c0_9, %c0_10], %17 {strides = array<i32>} : memref<8x128xf32, #tpu.memory_space<vmem>>, vector<8x128xf32>,
    return
  }
  func.func @transform_0(%arg0: i32, %arg1: i32) -> (i32, i32) {
    %c0_i32 = arith.constant 0 : i32
    %c0_i32_0 = arith.constant 0 : i32
    return %arg0, %c0_i32 : i32, i32
  }
  func.func @transform_1(%arg0: i32, %arg1: i32) -> (i32, i32) {
    %c0_i32 = arith.constant 0 : i32
    %c0_i32_0 = arith.constant 0 : i32
    return %c0_i32, %arg1 : i32, i32
  }
  func.func @transform_2(%arg0: i32, %arg1: i32) -> (i32, i32) {
    %c0_i32 = arith.constant 0 : i32
    %c0_i32_0 = arith.constant 0 : i32
    return %c0_i32, %arg1 : i32, i32
  }
  func.func @transform_3(%arg0: i32, %arg1: i32) -> (i32, i32) {
    %c0_i32 = arith.constant 0 : i32
    return %arg0, %arg1 : i32, i32
  }
}

</mosaic_0001>

<llo_original>
// kernel: tpu_custom_call.1
$region0: #{tpu_custom_call.1}
  #allocation0 [shape = 'u32[]', space=smem, size = 0x4, offset = 0x4, fixed_abs, tag = 'smem constant byte address 0x4 - core index']
  #allocation1 [shape = 'u32[144,128]{1,0:T(1,128)}', space=vmem, size = 0x12000, scoped, tag = 'internal scratch']
  %s0 = inlined_call_operand.hbm [shape: f32[8,32], index: 0, kind: input, shape index: {}]
  %s1 = inlined_call_operand.hbm [shape: f32[32,128], index: 1, kind: input, shape index: {}]
  %s2 = inlined_call_operand.vmem [shape: f32[1,128], index: 2, kind: input, shape index: {}]
  %s3 = inlined_call_operand.hbm [shape: f32[8,128], index: 3, kind: output, shape index: {}]
  %s4 = sld [smem:[#allocation0]]
  $region30: #{tpu_custom_call.1} parent=0
    _
  %s6 = ssub.s32 1, %s4
  %s7 = scalar_select 0, %s6, %s4
  $region1: #{tpu_custom_call.1} parent=0
    #allocation2 [shape = 'u8[4096]{0}', space=vmem, size = 0x1000, scoped, tag = 'input window, operand 0, single buffered']
    #allocation3 [shape = 's32[1]{0}', space=sflag, size = 0x4, scoped, tag = 'scoped memory for tpu_custom_call.1']
    #allocation4 [shape = 's32[1]{0}', space=sflag, size = 0x4, scoped, tag = 'scoped memory for tpu_custom_call.1']
    #allocation5 [shape = 'u8[16384]{0}', space=vmem, size = 0x4000, scoped, tag = 'input window, operand 1, single buffered']
    #allocation6 [shape = 's32[1]{0}', space=sflag, size = 0x4, scoped, tag = 'scoped memory for tpu_custom_call.1']
    #allocation7 [shape = 'u8[4096]{0}', space=vmem, size = 0x1000, scoped, tag = 'output window, operand 0, single buffered']
    %8 = vsyncpa [#allocation3], 0
    %9 = vsyncpa [#allocation6], 0
    %10 = vsyncpa [#allocation4], 0
    // Predicated region
    $region2: #{tpu_custom_call.1} parent=1 // pred_check
      _
    $region3: #{tpu_custom_call.1} parent=1 // pred_check_branch
      %12 = sbr.rel (0) target = $region5
    $region4: #{tpu_custom_call.1} parent=1 // pred_region
      %s14 = ssub.s32 128, 128
      %15 = vsyncadd [#allocation3], %s14
      %s17 = sshll.u32 [#allocation2], 4
      %s18 = int_to_ptr.vmem [resolvable:$true] %s17
      %20 = dma.hbm_to_vmem [thread:$0]  %s0, 128, %s18, [#allocation3]
    $region5: #{tpu_custom_call.1} parent=1 // pred_fallthru
      _
    // Predicated region
    $region6: #{tpu_custom_call.1} parent=1 // pred_check
      _
    $region7: #{tpu_custom_call.1} parent=1 // pred_check_branch
      %22 = sbr.rel (0) target = $region9
    $region8: #{tpu_custom_call.1} parent=1 // pred_region
      %s24 = ssub.s32 512, 512
      %25 = vsyncadd [#allocation6], %s24
      %s26 = sshll.u32 [#allocation5], 4
      %s27 = int_to_ptr.vmem [resolvable:$true] %s26
      %32 = dma.hbm_to_vmem [thread:$0]  %s1, 512, %s27, [#allocation6], 128, 128, 8
    $region9: #{tpu_custom_call.1} parent=1 // pred_fallthru
      _
    // Predicated region
    $region10: #{tpu_custom_call.1} parent=1 // pred_check
      _
    $region11: #{tpu_custom_call.1} parent=1 // pred_check_branch
      %34 = sbr.rel (0) target = $region13
    $region12: #{tpu_custom_call.1} parent=1 // pred_region
      _
    $region13: #{tpu_custom_call.1} parent=1 // pred_fallthru
      _
    // Predicated region
    $region14: #{tpu_custom_call.1} parent=1 // pred_check
      _
    $region15: #{tpu_custom_call.1} parent=1 // pred_check_branch
      %36 = sbr.rel (0) target = $region17
    $region16: #{tpu_custom_call.1} parent=1 // pred_region
      %37 = dma.done [#allocation3], 128
    $region17: #{tpu_custom_call.1} parent=1 // pred_fallthru
      _
    // Predicated region
    $region18: #{tpu_custom_call.1} parent=1 // pred_check
      _
    $region19: #{tpu_custom_call.1} parent=1 // pred_check_branch
      %39 = sbr.rel (0) target = $region21
    $region20: #{tpu_custom_call.1} parent=1 // pred_region
      %40 = dma.done [#allocation6], 512
    $region21: #{tpu_custom_call.1} parent=1 // pred_fallthru
      _
    %v41 = vld [vmem:[#allocation2] sm:$0xff]
    %v42 = vld [vmem:[#allocation5] sm:$0xff]
    %v43 = vld [vmem:[#allocation5 + $0x8] sm:$0xff]
    %v44 = vld [vmem:[#allocation5 + $0x10] sm:$0xff]
    %v45 = vld [vmem:[#allocation5 + $0x18] sm:$0xff]
    %v46 = vmul.f32 %v41, %v41
    %vm47 = vcmask 261120
    %v48 = vsel %vm47, %v46, 0.0
    %49 = vadd.xlane.f32.xlu0 %v48
    %v50 = vpop.xlane.xlu0 %49
    %v51 = vmax.f32 %v50, 1e-24
    %v52 = vrsqrt.pop %v51
    %v54 = vsel %vm47, %v41, 0
    %56 = vmatprep.subr.mxu0 0.0
    %57 = vmatpush1.msra.mxu0 %v42
    %58 = vmatprep.subr.mxu0 0.0
    %59 = vmatpush1.msra.mxu0 %v43
    %60 = vmatprep.subr.mxu0 0.0
    %61 = vmatpush1.msra.mxu0 %v44
    %62 = vmatprep.subr.mxu0 0.0
    %63 = vmatpush1.msra.mxu0 %v45
    %64 = vmatprep.subr.mxu0 0.0
    %65 = vmatpush1.msra.mxu0 0.0
    %66 = vmatprep.subr.mxu0 0.0
    %67 = vmatpush1.msra.mxu0 0.0
    %68 = vmatprep.subr.mxu0 0.0
    %69 = vmatpush1.msra.mxu0 0.0
    %70 = vmatprep.subr.mxu0 0.0
    %71 = vmatpush1.msra.mxu0 0.0
    %72 = vmatprep.subr.mxu0 0.0
    %73 = vmatpush1.msra.mxu0 0.0
    %74 = vmatprep.subr.mxu0 0.0
    %75 = vmatpush1.msra.mxu0 0.0
    %76 = vmatprep.subr.mxu0 0.0
    %77 = vmatpush1.msra.mxu0 0.0
    %78 = vmatprep.subr.mxu0 0.0
    %79 = vmatpush1.msra.mxu0 0.0
    %80 = vmatprep.subr.mxu0 0.0
    %81 = vmatpush1.msra.mxu0 0.0
    %82 = vmatprep.subr.mxu0 0.0
    %83 = vmatpush1.msra.mxu0 0.0
    %84 = vmatprep.subr.mxu0 0.0
    %85 = vmatpush1.msra.mxu0 0.0
    %86 = vmatprep.subr.mxu0 0.0
    %87 = vmatpush1.msra.mxu0 0.0
    %88 = vmatprep.subr.mxu0 0.0
    %89 = vmatpush1.msra.mxu0 0.0
    %90 = vmatprep.subr.mxu0 0.0
    %91 = vmatpush1.msra.mxu0 0.0
    %92 = vmatprep.subr.mxu0 0.0
    %93 = vmatpush1.msra.mxu0 0.0
    %94 = vmatprep.subr.mxu0 0.0
    %95 = vmatpush1.msra.mxu0 0.0
    %96 = vmatprep.subr.mxu0 0.0
    %97 = vmatpush1.msra.mxu0 0.0
    %98 = vmatprep.subr.mxu0 0.0
    %99 = vmatpush1.msra.mxu0 0.0
    %100 = vmatprep.subr.mxu0 0.0
    %101 = vmatpush1.msra.mxu0 0.0
    %102 = vmatprep.subr.mxu0 0.0
    %103 = vmatpush1.msra.mxu0 0.0
    %104 = vmatprep.subr.mxu0 0.0
    %105 = vmatpush1.msra.mxu0 0.0
    %106 = vmatprep.subr.mxu0 0.0
    %107 = vmatpush1.msra.mxu0 0.0
    %108 = vmatprep.subr.mxu0 0.0
    %109 = vmatpush1.msra.mxu0 0.0
    %110 = vmatprep.subr.mxu0 0.0
    %111 = vmatpush1.msra.mxu0 0.0
    %112 = vmatprep.subr.mxu0 0.0
    %113 = vmatpush1.msra.mxu0 0.0
    %114 = vmatprep.subr.mxu0 0.0
    %115 = vmatpush1.msra.mxu0 0.0
    %116 = vmatprep.subr.mxu0 0.0
    %117 = vmatpush1.msra.mxu0 0.0
    %118 = vmatprep.subr.mxu0 0.0
    %119 = vmatpush1.msra.mxu0 0.0
    %120 = vmatprep.mubr.f32.mxu0 0.0
    %121 = vmatmul.mubr.f32.gmra.mrb[0].mxu0 %v54
    %v122 = vpop.f32.mrb[0].mxu0
    %v123 = vadd.f32 0.0, %v122
    %v124 = vpop.f32.mrb[0].mxu0
    %125 = vdwg.mxu0
    %v126 = vmul.f32 %v123, %v52
    %v127 = vld [vmem:[%s2] sm:$0x1]
    %v129 = vlaneseq
    %v130 = vshrl.u32 %v129, 7
    %v131 = vsub.s32 0, %v130
    %v132 = vrot.slane %v127, %v131
    %v134 = vmul.f32 %v126, %v132
    %v135 = vmax.f32 %v134, -1.0
    %v136 = vmin.f32 %v135, 1.0
    %137 = vst [vmem:[#allocation7] sm:$0xff] %v136
    // Predicated region
    $region22: #{tpu_custom_call.1} parent=1 // pred_check
      _
    $region23: #{tpu_custom_call.1} parent=1 // pred_check_branch
      %139 = sbr.rel (0) target = $region25
    $region24: #{tpu_custom_call.1} parent=1 // pred_region
      %s141 = ssub.s32 128, 128
      %142 = vsyncadd [#allocation4], %s141
      %s144 = sshll.u32 [#allocation7], 4
      %s145 = int_to_ptr.vmem [resolvable:$true] %s144
      %147 = dma.vmem_to_hbm [thread:$0]  %s145, 128, %s3, [#allocation4]
    $region25: #{tpu_custom_call.1} parent=1 // pred_fallthru
      _
    // Predicated region
    $region26: #{tpu_custom_call.1} parent=1 // pred_check
      _
    $region27: #{tpu_custom_call.1} parent=1 // pred_check_branch
      %149 = sbr.rel (0) target = $region29
    $region28: #{tpu_custom_call.1} parent=1 // pred_region
      %150 = dma.done [#allocation4], 128
    $region29: #{tpu_custom_call.1} parent=1 // pred_fallthru
      _
    %151 = vsyncpa [#allocation3], 1
    %152 = vsyncpa [#allocation6], 1
    %153 = vsyncpa [#allocation4], 1

</llo_original>
